<compile_context>
chip_gen: v6e
topology: v6e:2x2x1
jax: 0.10.0
libtpu: 0.0.40
codegen_flags: <defaults>
</compile_context>

<pallas_src>
import jax
import jax.numpy as jnp
from jax import lax
from jax.experimental import pallas as pl
from jax.experimental.pallas import tpu as pltpu

MEMORY_SIZE = 16      # logical memory slots (matches the PyTorch module)
M_PAD = 128           # memory-slot axis padded to a full TPU lane width
NEG_INF = -1e30       # finite "minus infinity" bias for padded softmax slots (f32 only!)


def _round_up(x, m):
    return ((x + m - 1) // m) * m


def _softmax_probs(logits):
    """Row-wise softmax in f32; padded slots carry a -1e30 bias -> weight exactly 0."""
    logits = logits - jnp.max(logits, axis=-1, keepdims=True)
    e = jnp.exp(logits)
    return e * pl.reciprocal(jnp.sum(e, axis=-1, keepdims=True), approx=False)


def instance_memory_forward(x, memory, write_weight, write_bias,
                            read_weight, read_bias, *,
                            max_tile_n=2048, out_dtype=jnp.float32):
    """Forward pass of InstanceMemory.

    x:            [..., d_model]  (flattened to [N, d_model])
    memory:       [memory_size, d_model]                   (nn.Parameter)
    write_weight: [memory_size, d_model], write_bias: [memory_size]  (nn.Linear)
    read_weight:  [memory_size, d_model], read_bias:  [memory_size]
    returns       [1, N, d_model] in out_dtype (f32 default; bf16 optional)
    """
    d_model = memory.shape[-1]
    m = memory.shape[0]
    assert m <= M_PAD, "memory_size must be <= 128"
    n_tokens = x.size // d_model
    x2d = x.reshape(n_tokens, d_model)              # metadata-only reshape, no copy

    x_bytes = x2d.dtype.itemsize
    out_bytes = jnp.dtype(out_dtype).itemsize

    # --- token-axis tiling ----------------------------------------------------
    # Big tiles amortize the ~0.35 us/grid-step cost; cap so the x/out double
    # buffers stay ~<=16 MiB even at d_model=512 (fits v7x's 64 MiB VMEM).
    tile_cap = max(256, ((4 * 2 ** 20) // (d_model * max(x_bytes, out_bytes))) // 256 * 256)
    tile_n = min(max_tile_n, tile_cap, _round_up(max(n_tokens, 16), 16))
    num_tiles = pl.cdiv(n_tokens, tile_n)

    # Write pass: split the tile range into contiguous chunks so the leading
    # grid axis can be "parallel" (both v7x TensorCores stream tokens); partial
    # memories are combined by a tiny XLA add below.  On single-TC chips this
    # just runs sequentially at negligible extra cost.
    num_partials = 2 if num_tiles >= 2 else 1
    tiles_per_partial = pl.cdiv(num_tiles, num_partials)

    # --- padded parameters (tiny: memory-slot axis 16 -> 128 lanes) -----------
    mem_pad = jnp.pad(memory.astype(jnp.float32), ((0, M_PAD - m), (0, 0)))     # [M_PAD, D] f32

    def pad_w(w):   # torch Linear weight [M, D] -> [D, M_PAD] bf16
        return jnp.pad(w.astype(jnp.float32).T,
                       ((0, 0), (0, M_PAD - m))).astype(jnp.bfloat16)

    def pad_b(b):   # [M] -> [1, M_PAD] f32; pad slots get -1e30 -> softmax weight 0
        return jnp.pad(b.astype(jnp.float32), (0, M_PAD - m),
                       constant_values=NEG_INF).reshape(1, M_PAD)

    ww, bw = pad_w(write_weight), pad_b(write_bias)
    wr, br = pad_w(read_weight), pad_b(read_bias)

    # --- kernels ---------------------------------------------------------------
    def write_kernel(x_ref, w_ref, b_ref, part_ref):
        p = pl.program_id(0)
        t = pl.program_id(1)

        # part_ref's block index is constant across the t (reduction) axis, so
        # it stays VMEM-resident: standard accumulator pattern.
        @pl.when(t == 0)
        def _init():
            part_ref[...] = jnp.zeros_like(part_ref)

        # Logical tile index. It may overhang num_tiles when the tile count is
        # not divisible by num_partials (the x index_map clamps the DMA to an
        # in-bounds block; the mask below zeroes its contribution), and the
        # last real tile may be partial (stale rows also masked out).
        tile_idx = p * tiles_per_partial + t
        row = lax.broadcasted_iota(jnp.int32, (tile_n, 1), 0)
        valid = row < (n_tokens - tile_idx * tile_n)

        xb = jnp.where(valid, x_ref[...], 0).astype(jnp.bfloat16)    # in-kernel bf16 cast
        logits = jnp.dot(xb, w_ref[...], preferred_element_type=jnp.float32) + b_ref[...]
        probs = _softmax_probs(logits)
        probs = jnp.where(valid, probs, 0.0)

        # partial_memory += w^T @ x, contracting the token axis of both operands
        # directly (no [TN, M] -> [M, TN] transpose through the XLU).
        part_ref[...] += lax.dot_general(
            probs.astype(jnp.bfloat16), xb,
            dimension_numbers=(((0,), (0,)), ((), ())),
            preferred_element_type=jnp.float32)

    def read_kernel(x_ref, mem_ref, w_ref, b_ref, out_ref):
        xb = x_ref[...].astype(jnp.bfloat16)
        logits = jnp.dot(xb, w_ref[...], preferred_element_type=jnp.float32) + b_ref[...]
        probs = _softmax_probs(logits)
        # bf16 x bf16 -> f32 accumulation; ragged last-tile rows are garbage but
        # row-local and discarded by the masked out-of-bounds store.
        out_ref[...] = jnp.dot(probs.astype(jnp.bfloat16), mem_ref[...],
                               preferred_element_type=jnp.float32).astype(out_ref.dtype)

    # --- VMEM budget / scheduler hints -----------------------------------------
    vmem_need = (2 * tile_n * d_model * x_bytes            # x double buffer
                 + 2 * tile_n * d_model * out_bytes        # out double buffer
                 + 6 * M_PAD * d_model * 4                 # memory / partial blocks
                 + 8 * tile_n * M_PAD * 4                  # logits / probs temporaries
                 + (4 << 20))                              # headroom
    vmem_limit = int(min(vmem_need, 64 * 2 ** 20)) if vmem_need > (12 << 20) else None

    flops = 4 * n_tokens * d_model * M_PAD
    write_cost = pl.CostEstimate(
        flops=int(flops), transcendentals=int(n_tokens * M_PAD),
        bytes_accessed=int(n_tokens * d_model * x_bytes
                           + num_partials * M_PAD * d_model * 4
                           + d_model * M_PAD * 2 + M_PAD * 4))
    read_cost = pl.CostEstimate(
        flops=int(flops), transcendentals=int(n_tokens * M_PAD),
        bytes_accessed=int(n_tokens * d_model * (x_bytes + out_bytes)
                           + M_PAD * d_model * 2
                           + d_model * M_PAD * 2 + M_PAD * 4))

    # --- pass 0: partial memories = sum_tiles (softmax(x Ww + bw)^T @ x) -------
    partials = pl.pallas_call(
        write_kernel,
        out_shape=jax.ShapeDtypeStruct((num_partials, M_PAD, d_model), jnp.float32),
        grid_spec=pltpu.PrefetchScalarGridSpec(
            num_scalar_prefetch=0,
            grid=(num_partials, tiles_per_partial),
            in_specs=[
                pl.BlockSpec(
                    (tile_n, d_model),
                    lambda p, t: (jnp.minimum(p * tiles_per_partial + t,
                                              num_tiles - 1), 0)),     # x tile (clamped)
                pl.BlockSpec((d_model, M_PAD), lambda p, t: (0, 0)),   # Ww (loop-invariant)
                pl.BlockSpec((1, M_PAD), lambda p, t: (0, 0)),         # bw
            ],
            out_specs=pl.BlockSpec((None, M_PAD, d_model), lambda p, t: (p, 0, 0)),
        ),
        compiler_params=pltpu.CompilerParams(
            dimension_semantics=("parallel", "arbitrary"),
            vmem_limit_bytes=vmem_limit),
        cost_estimate=write_cost,
    )(x2d, ww, bw)

    # Tiny [M_PAD, D] combine + single bf16 cast for the read-pass MXU operand.
    memory_bf16 = (mem_pad + jnp.sum(partials, axis=0)).astype(jnp.bfloat16)

    # --- pass 1: read_vector = softmax(x Wr + br) @ memory ---------------------
    out = pl.pallas_call(
        read_kernel,
        out_shape=jax.ShapeDtypeStruct((n_tokens, d_model), out_dtype),
        grid_spec=pltpu.PrefetchScalarGridSpec(
            num_scalar_prefetch=0,
            grid=(num_tiles,),
            in_specs=[
                pl.BlockSpec((tile_n, d_model), lambda i: (i, 0)),     # x tile
                pl.BlockSpec((M_PAD, d_model), lambda i: (0, 0)),      # memory (bf16, resident)
                pl.BlockSpec((d_model, M_PAD), lambda i: (0, 0)),      # Wr
                pl.BlockSpec((1, M_PAD), lambda i: (0, 0)),            # br
            ],
            out_specs=pl.BlockSpec((tile_n, d_model), lambda i: (i, 0)),
        ),
        compiler_params=pltpu.CompilerParams(
            dimension_semantics=("parallel",),
            vmem_limit_bytes=vmem_limit),
        cost_estimate=read_cost,
    )(x2d, memory_bf16, wr, br)

    return out[None]          # unsqueeze(0) -> [1, N, D], metadata-only


def _reference(x, memory, write_weight, write_bias, read_weight, read_bias):
    """Pure-JAX f32 reference mirroring the PyTorch forward."""
    d_model = memory.shape[-1]
    x2d = x.reshape(-1, d_model).astype(jnp.float32)
    w = jax.nn.softmax(x2d @ write_weight.T + write_bias, axis=-1)
    mem = memory + w.T @ x2d
    r = jax.nn.softmax(x2d @ read_weight.T + read_bias, axis=-1)
    return (r @ mem)[None, ...]


if __name__ == "__main__":
    D_MODEL = 128
    key = jax.random.PRNGKey(0)
    k_x, k_mem, k_ww, k_bw, k_wr, k_br = jax.random.split(key, 6)

    # small input: batch=2, seq=8, d_model=128 -> N = 16 tokens
    x = jax.random.normal(k_x, (2, 8, D_MODEL), dtype=jnp.float32)

    memory = jax.random.normal(k_mem, (MEMORY_SIZE, D_MODEL), dtype=jnp.float32)
    # nn.Linear(d_model, memory_size): weight [M, D], bias [M]
    ww = 0.05 * jax.random.normal(k_ww, (MEMORY_SIZE, D_MODEL), dtype=jnp.float32)
    bw = 0.05 * jax.random.normal(k_bw, (MEMORY_SIZE,), dtype=jnp.float32)
    wr = 0.05 * jax.random.normal(k_wr, (MEMORY_SIZE, D_MODEL), dtype=jnp.float32)
    br = 0.05 * jax.random.normal(k_br, (MEMORY_SIZE,), dtype=jnp.float32)

    out = instance_memory_forward(x, memory, ww, bw, wr, br)
    jax.block_until_ready(out)

    ref = _reference(x, memory, ww, bw, wr, br)
    assert out.shape == (1, 16, D_MODEL), out.shape
    # bf16 MXU operands (x, Ww, Wr, probs, memory) vs f32 reference -> loosened tolerance.
    max_err = float(jnp.max(jnp.abs(out - ref)))
    assert jnp.allclose(out, ref, atol=3e-2, rtol=3e-2), f"max abs err {max_err}"

    # Ragged token count (N = 15): exercises the partial-tile masking and the
    # slice-free, exact-size output path.
    x2 = jax.random.normal(k_x, (3, 5, D_MODEL), dtype=jnp.float32)
    out2 = instance_memory_forward(x2, memory, ww, bw, wr, br)
    jax.block_until_ready(out2)
    ref2 = _reference(x2, memory, ww, bw, wr, br)
    assert out2.shape == (1, 15, D_MODEL), out2.shape
    max_err2 = float(jnp.max(jnp.abs(out2 - ref2)))
    assert jnp.allclose(out2, ref2, atol=3e-2, rtol=3e-2), f"max abs err {max_err2}"

    print("KERNEL_OK")
</pallas_src>

<mosaic_0001>
module attributes {stable_mosaic.version = 11 : i64} {
  func.func @write_kernel(%arg0: i32, %arg1: i32, %arg2: memref<16x128xf32, #tpu.memory_space<vmem>>, %arg3: memref<128x128xbf16, #tpu.memory_space<vmem>>, %arg4: memref<1x128xf32, #tpu.memory_space<vmem>>, %arg5: memref<1x128x128xf32, #tpu.memory_space<vmem>>) attributes {dimension_semantics = [#tpu.dimension_semantics<parallel>, #tpu.dimension_semantics<arbitrary>], iteration_bounds = array<i64: 1, 1>, scalar_prefetch = 0 : i64, scratch_operands = 0 : i64, tpu.core_type = #tpu.core_type<tc>, window_params = [{transform_indices = @transform_0, window_bounds = array<i64: 16, 128>}, {pipeline_mode = #tpu.pipeline_mode<synchronous>, transform_indices = @transform_1, window_bounds = array<i64: 128, 128>}, {pipeline_mode = #tpu.pipeline_mode<synchronous>, transform_indices = @transform_2, window_bounds = array<i64: 1, 128>}, {transform_indices = @transform_3, window_bounds = array<i64: 1, 128, 128>}]} {
    %c0_i32 = arith.constant 0 : i32
    %0 = arith.cmpi eq, %arg1, %c0_i32 : i32
    %1 = arith.extui %0 : i1 to i32
    %c0_i32_0 = arith.constant 0 : i32
    %2 = arith.cmpi ne, %1, %c0_i32_0 : i32
    scf.if %2 {
      %cst_18 = arith.constant 0.000000e+00 : f32
      %44 = vector.broadcast %cst_18 : f32 to vector<128x128xf32>
      %c0_19 = arith.constant 0 : index
      %c0_20 = arith.constant 0 : index
      %c0_21 = arith.constant 0 : index
      %45 = vector.load %arg5[%c0_19, %c0_20, %c0_21] : memref<1x128x128xf32, #tpu.memory_space<vmem>>, vector<1x128x128xf32>
      %46 = vector.shape_cast %45 : vector<1x128x128xf32> to vector<128x128xf32>
      %47 = vector.shape_cast %44 : vector<128x128xf32> to vector<1x128x128xf32>
      tpu.vector_store %arg5[%c0_19, %c0_20, %c0_21], %47 {strides = array<i32>} : memref<1x128x128xf32, #tpu.memory_space<vmem>>, vector<1x128x128xf32>,
    } else {
    }
    %c1_i32 = arith.constant 1 : i32
    %3 = arith.muli %arg0, %c1_i32 : i32
    %4 = arith.addi %3, %arg1 : i32
    %5 = tpu.iota {dimensions = array<i32: 0>} : vector<16x1xi32>
    %c16_i32 = arith.constant 16 : i32
    %6 = arith.muli %4, %c16_i32 : i32
    %c16_i32_1 = arith.constant 16 : i32
    %7 = arith.subi %c16_i32_1, %6 : i32
    %8 = vector.broadcast %7 : i32 to vector<16x1xi32>
    %9 = arith.cmpi slt, %5, %8 : vector<16x1xi32>
    %c0 = arith.constant 0 : index
    %c0_2 = arith.constant 0 : index
    %10 = vector.load %arg2[%c0, %c0_2] : memref<16x128xf32, #tpu.memory_space<vmem>>, vector<16x128xf32>
    %c0_i32_3 = arith.constant 0 : i32
    %11 = arith.sitofp %c0_i32_3 : i32 to f32
    %12 = vector.shape_cast %9 : vector<16x1xi1> to vector<16x1xi1>
    %13 = vector.broadcast %12 : vector<16x1xi1> to vector<16x128xi1>
    %14 = vector.broadcast %11 : f32 to vector<16x128xf32>
    %15 = arith.select %13, %10, %14 : vector<16x128xi1>, vector<16x128xf32>
    %16 = arith.truncf %15 : vector<16x128xf32> to vector<16x128xbf16>
    %c0_4 = arith.constant 0 : index
    %c0_5 = arith.constant 0 : index
    %17 = vector.load %arg3[%c0_4, %c0_5] : memref<128x128xbf16, #tpu.memory_space<vmem>>, vector<128x128xbf16>
    %cst = arith.constant dense<0.000000e+00> : vector<16x128xf32>
    %18 = tpu.matmul %16, %17, %cst {dimension_numbers = #tpu.dot_dimension_numbers<[1], [0], [0], [1], [0, 0, 1, 1], [], []>} : vector<16x128xbf16>, vector<128x128xbf16>, vector<16x128xf32> -> vector<16x128xf32>
    %c0_6 = arith.constant 0 : index
    %c0_7 = arith.constant 0 : index
    %19 = vector.load %arg4[%c0_6, %c0_7] : memref<1x128xf32, #tpu.memory_space<vmem>>, vector<1x128xf32>
    %20 = vector.broadcast %19 : vector<1x128xf32> to vector<16x128xf32>
    %21 = arith.addf %18, %20 : vector<16x128xf32>
    %cst_8 = arith.constant dense<0xFF800000> : vector<16xf32>
    %22 = vector.multi_reduction <maximumf>, %21, %cst_8 [1] : vector<16x128xf32> to vector<16xf32>
    %23 = vector.shape_cast %22 : vector<16xf32> to vector<16x1xf32>
    %24 = vector.broadcast %23 : vector<16x1xf32> to vector<16x128xf32>
    %25 = arith.subf %21, %24 : vector<16x128xf32>
    %26 = math.exp %25 : vector<16x128xf32>
    %cst_9 = arith.constant dense<0.000000e+00> : vector<16xf32>
    %27 = vector.multi_reduction <add>, %26, %cst_9 [1] : vector<16x128xf32> to vector<16xf32>
    %28 = vector.shape_cast %27 : vector<16xf32> to vector<16x1xf32>
    %29 = tpu.reciprocal %28 : vector<16x1xf32> -> vector<16x1xf32>
    %30 = vector.broadcast %29 : vector<16x1xf32> to vector<16x128xf32>
    %31 = arith.mulf %26, %30 : vector<16x128xf32>
    %cst_10 = arith.constant 0.000000e+00 : f32
    %32 = vector.shape_cast %9 : vector<16x1xi1> to vector<16x1xi1>
    %33 = vector.broadcast %32 : vector<16x1xi1> to vector<16x128xi1>
    %34 = vector.broadcast %cst_10 : f32 to vector<16x128xf32>
    %35 = arith.select %33, %31, %34 : vector<16x128xi1>, vector<16x128xf32>
    %c0_11 = arith.constant 0 : index
    %c0_12 = arith.constant 0 : index
    %c0_13 = arith.constant 0 : index
    %36 = vector.load %arg5[%c0_11, %c0_12, %c0_13] : memref<1x128x128xf32, #tpu.memory_space<vmem>>, vector<1x128x128xf32>
    %37 = vector.shape_cast %36 : vector<1x128x128xf32> to vector<128x128xf32>
    %38 = arith.truncf %35 : vector<16x128xf32> to vector<16x128xbf16>
    %cst_14 = arith.constant dense<0.000000e+00> : vector<128x128xf32>
    %39 = tpu.matmul %38, %16, %cst_14 {dimension_numbers = #tpu.dot_dimension_numbers<[0], [0], [1], [1], [0, 1, 1, 1], [], []>} : vector<16x128xbf16>, vector<16x128xbf16>, vector<128x128xf32> -> vector<128x128xf32>
    %40 = arith.addf %37, %39 : vector<128x128xf32>
    %c0_15 = arith.constant 0 : index
    %c0_16 = arith.constant 0 : index
    %c0_17 = arith.constant 0 : index
    %41 = vector.load %arg5[%c0_15, %c0_16, %c0_17] : memref<1x128x128xf32, #tpu.memory_space<vmem>>, vector<1x128x128xf32>
    %42 = vector.shape_cast %41 : vector<1x128x128xf32> to vector<128x128xf32>
    %43 = vector.shape_cast %40 : vector<128x128xf32> to vector<1x128x128xf32>
    tpu.vector_store %arg5[%c0_15, %c0_16, %c0_17], %43 {strides = array<i32>} : memref<1x128x128xf32, #tpu.memory_space<vmem>>, vector<1x128x128xf32>,
    return
  }
  func.func @transform_0(%arg0: i32, %arg1: i32) -> (i32, i32) {
    %c1_i32 = arith.constant 1 : i32
    %0 = arith.muli %arg0, %c1_i32 : i32
    %1 = arith.addi %0, %arg1 : i32
    %c0_i32 = arith.constant 0 : i32
    %2 = arith.minsi %1, %c0_i32 : i32
    %c0_i32_0 = arith.constant 0 : i32
    %c0_i32_1 = arith.constant 0 : i32
    return %2, %c0_i32_0 : i32, i32
  }
  func.func @transform_1(%arg0: i32, %arg1: i32) -> (i32, i32) {
    %c0_i32 = arith.constant 0 : i32
    %c0_i32_0 = arith.constant 0 : i32
    %c0_i32_1 = arith.constant 0 : i32
    return %c0_i32, %c0_i32_0 : i32, i32
  }
  func.func @transform_2(%arg0: i32, %arg1: i32) -> (i32, i32) {
    %c0_i32 = arith.constant 0 : i32
    %c0_i32_0 = arith.constant 0 : i32
    %c0_i32_1 = arith.constant 0 : i32
    return %c0_i32, %c0_i32_0 : i32, i32
  }
  func.func @transform_3(%arg0: i32, %arg1: i32) -> (i32, i32, i32) {
    %c0_i32 = arith.constant 0 : i32
    %c0_i32_0 = arith.constant 0 : i32
    %c0_i32_1 = arith.constant 0 : i32
    return %arg0, %c0_i32, %c0_i32_0 : i32, i32, i32
  }
}

</mosaic_0001>

<llo_original>
// kernel: tpu_custom_call.1
$region0: #{tpu_custom_call.1}
  #allocation0 [shape = 'u32[]', space=smem, size = 0x4, offset = 0x4, fixed_abs, tag = 'smem constant byte address 0x4 - core index']
  #allocation1 [shape = 'u32[144,128]{1,0:T(1,128)}', space=vmem, size = 0x12000, scoped, tag = 'internal scratch']
  %s0 = inlined_call_operand.hbm [shape: f32[16,128], index: 0, kind: input, shape index: {}]
  %s1 = inlined_call_operand.hbm [shape: bf16[128,128], index: 1, kind: input, shape index: {}]
  %s2 = inlined_call_operand.vmem [shape: f32[1,128], index: 2, kind: input, shape index: {}]
  %s3 = inlined_call_operand.hbm [shape: f32[1,128,128], index: 3, kind: output, shape index: {}]
  %s4 = sld [smem:[#allocation0]]
  $region34: #{tpu_custom_call.1} parent=0
    _
  %s6 = ssub.s32 1, %s4
  %s7 = scalar_select 0, %s6, %s4
  $region1: #{tpu_custom_call.1} parent=0
    #allocation2 [shape = 'u8[8192]{0}', space=vmem, size = 0x2000, scoped, tag = 'input window, operand 0, single buffered']
    #allocation3 [shape = 's32[1]{0}', space=sflag, size = 0x4, scoped, tag = 'scoped memory for tpu_custom_call.1']
    #allocation4 [shape = 's32[1]{0}', space=sflag, size = 0x4, scoped, tag = 'scoped memory for tpu_custom_call.1']
    #allocation5 [shape = 'u8[32768]{0}', space=vmem, size = 0x8000, scoped, tag = 'input window, operand 1, single buffered']
    #allocation6 [shape = 's32[1]{0}', space=sflag, size = 0x4, scoped, tag = 'scoped memory for tpu_custom_call.1']
    #allocation7 [shape = 'u8[65536]{0}', space=vmem, size = 0x10000, scoped, tag = 'output window, operand 0, single buffered']
    %8 = vsyncpa [#allocation3], 0
    %9 = vsyncpa [#allocation6], 0
    %10 = vsyncpa [#allocation4], 0
    // Predicated region
    $region2: #{tpu_custom_call.1} parent=1 // pred_check
      _
    $region3: #{tpu_custom_call.1} parent=1 // pred_check_branch
      %12 = sbr.rel (0) target = $region5
    $region4: #{tpu_custom_call.1} parent=1 // pred_region
      %s13 = sadd.s32 0, 0
      %p14 = scmp.lt.s32.totalorder %s13, 0
      %s15 = scalar_select %p14, %s13, 0
      %s16 = smul.u32 2, %s15
      %s18 = ssub.s32 256, 256
      %19 = vsyncadd [#allocation3], %s18
      %s20 = smul.addr %s16, 128
      %s21 = scalar_lea.hbm %s0, %s20
      %s22 = sshll.u32 [#allocation2], 4
      %s23 = int_to_ptr.vmem [resolvable:$true] %s22
      %28 = dma.hbm_to_vmem [thread:$0]  %s21, 256, %s23, [#allocation3], 128, 128, 8
    $region5: #{tpu_custom_call.1} parent=1 // pred_fallthru
      _
    // Predicated region
    $region6: #{tpu_custom_call.1} parent=1 // pred_check
      _
    $region7: #{tpu_custom_call.1} parent=1 // pred_check_branch
      %30 = sbr.rel (0) target = $region9
    $region8: #{tpu_custom_call.1} parent=1 // pred_region
      %s32 = ssub.s32 1024, 1024
      %33 = vsyncadd [#allocation6], %s32
      %s34 = sshll.u32 [#allocation5], 4
      %s35 = int_to_ptr.vmem [resolvable:$true] %s34
      %40 = dma.hbm_to_vmem [thread:$0]  %s1, 1024, %s35, [#allocation6], 64, 64, 4
    $region9: #{tpu_custom_call.1} parent=1 // pred_fallthru
      _
    // Predicated region
    $region10: #{tpu_custom_call.1} parent=1 // pred_check
      _
    $region11: #{tpu_custom_call.1} parent=1 // pred_check_branch
      %42 = sbr.rel (0) target = $region13
    $region12: #{tpu_custom_call.1} parent=1 // pred_region
      _
    $region13: #{tpu_custom_call.1} parent=1 // pred_fallthru
      _
    // Predicated region
    $region14: #{tpu_custom_call.1} parent=1 // pred_check
      _
    $region15: #{tpu_custom_call.1} parent=1 // pred_check_branch
      %44 = sbr.rel (0) target = $region17
    $region16: #{tpu_custom_call.1} parent=1 // pred_region
      %45 = dma.done [#allocation3], 256
    $region17: #{tpu_custom_call.1} parent=1 // pred_fallthru
      _
    // Predicated region
    $region18: #{tpu_custom_call.1} parent=1 // pred_check
      _
    $region19: #{tpu_custom_call.1} parent=1 // pred_check_branch
      %47 = sbr.rel (0) target = $region21
    $region20: #{tpu_custom_call.1} parent=1 // pred_region
      %48 = dma.done [#allocation6], 1024
    $region21: #{tpu_custom_call.1} parent=1 // pred_fallthru
      _
    %s49 = sadd.s32 0, 0
    %p50 = scmp.lt.s32.totalorder %s49, 0
    %s51 = scalar_select %p50, %s49, 0
    %s52 = smul.u32 2, %s51
    %p54 = scmp.eq.s32.totalorder 0, 0
    // Predicated region
    $region22: #{tpu_custom_call.1} parent=1 // pred_check
      %p55 = pneg %p54
    $region23: #{tpu_custom_call.1} parent=1 // pred_check_branch
      %57 = sbr.rel (%p55) target = $region25
    $region24: #{tpu_custom_call.1} parent=1 // pred_region
      %58 = vst [vmem:[#allocation7] sm:$0xff] 0.0
      %59 = vst [vmem:[#allocation7 + $0x8] sm:$0xff] 0.0
      %60 = vst [vmem:[#allocation7 + $0x10] sm:$0xff] 0.0
      %61 = vst [vmem:[#allocation7 + $0x18] sm:$0xff] 0.0
      %62 = vst [vmem:[#allocation7 + $0x20] sm:$0xff] 0.0
      %63 = vst [vmem:[#allocation7 + $0x28] sm:$0xff] 0.0
      %64 = vst [vmem:[#allocation7 + $0x30] sm:$0xff] 0.0
      %65 = vst [vmem:[#allocation7 + $0x38] sm:$0xff] 0.0
      %66 = vst [vmem:[#allocation7 + $0x40] sm:$0xff] 0.0
      %67 = vst [vmem:[#allocation7 + $0x48] sm:$0xff] 0.0
      %68 = vst [vmem:[#allocation7 + $0x50] sm:$0xff] 0.0
      %69 = vst [vmem:[#allocation7 + $0x58] sm:$0xff] 0.0
      %70 = vst [vmem:[#allocation7 + $0x60] sm:$0xff] 0.0
      %71 = vst [vmem:[#allocation7 + $0x68] sm:$0xff] 0.0
      %72 = vst [vmem:[#allocation7 + $0x70] sm:$0xff] 0.0
      %73 = vst [vmem:[#allocation7 + $0x78] sm:$0xff] 0.0
    $region25: #{tpu_custom_call.1} parent=1 // pred_fallthru
      _
    %s74 = sadd.s32 0, 0
    %v75 = vlaneseq
    %v76 = vshrl.u32 %v75, 7
    %v77 = vadd.s32 %v76, 8
    %s78 = smul.u32 %s74, 16
    %s79 = ssub.s32 16, %s78
    %v80 = vstv %s79
    %vm81 = vcmp.lt.s32.totalorder %v76, %v80
    %vm82 = vcmp.lt.s32.totalorder %v77, %v80
    %v83 = vld [vmem:[#allocation2] sm:$0xff]
    %v84 = vld [vmem:[#allocation2 + $0x8] sm:$0xff]
    %v85 = vsel %vm81, 1, 0
    %v86 = vsel %vm82, 1, 0
    %vm87 = vcmp.eq.s32.totalorder %v85, 1
    %vm88 = vcmp.eq.s32.totalorder %v86, 1
    %v89 = vsel %vm87, %v83, 0.0
    %v90 = vsel %vm88, %v84, 0.0
    %v91 = vpack.c.bf16 %v90, %v89
    %v92 = vld [vmem:[#allocation5] sm:$0xf]
    %v93 = vld [vmem:[#allocation5 + $0x4] sm:$0xf]
    %v94 = vld [vmem:[#allocation5 + $0x8] sm:$0xf]
    %v95 = vld [vmem:[#allocation5 + $0xc] sm:$0xf]
    %v96 = vld [vmem:[#allocation5 + $0x10] sm:$0xf]
    %v97 = vld [vmem:[#allocation5 + $0x14] sm:$0xf]
    %v98 = vld [vmem:[#allocation5 + $0x18] sm:$0xf]
    %v99 = vld [vmem:[#allocation5 + $0x1c] sm:$0xf]
    %v100 = vld [vmem:[#allocation5 + $0x20] sm:$0xf]
    %v101 = vld [vmem:[#allocation5 + $0x24] sm:$0xf]
    %v102 = vld [vmem:[#allocation5 + $0x28] sm:$0xf]
    %v103 = vld [vmem:[#allocation5 + $0x2c] sm:$0xf]
    %v104 = vld [vmem:[#allocation5 + $0x30] sm:$0xf]
    %v105 = vld [vmem:[#allocation5 + $0x34] sm:$0xf]
    %v106 = vld [vmem:[#allocation5 + $0x38] sm:$0xf]
    %v107 = vld [vmem:[#allocation5 + $0x3c] sm:$0xf]
    %v108 = vld [vmem:[%s2] sm:$0x1]
    %v110 = vlaneseq
    %v111 = vshrl.u32 %v110, 7
    %v112 = vsub.s32 0, %v111
    %v113 = vrot.slane %v108, %v112
    %v131 = vunpack.c.l.b16 %v92
    %v132 = vunpack.c.l.b16 %v93
    %v133 = vunpack.c.l.b16 %v94
    %v134 = vunpack.c.l.b16 %v95
    %v135 = vunpack.c.l.b16 %v96
    %v136 = vunpack.c.l.b16 %v97
    %v137 = vunpack.c.l.b16 %v98
    %v138 = vunpack.c.l.b16 %v99
    %v139 = vunpack.c.l.b16 %v100
    %v140 = vunpack.c.l.b16 %v101
    %v141 = vunpack.c.l.b16 %v102
    %v142 = vunpack.c.l.b16 %v103
    %v143 = vunpack.c.l.b16 %v104
    %v144 = vunpack.c.l.b16 %v105
    %v145 = vunpack.c.l.b16 %v106
    %v146 = vunpack.c.l.b16 %v107
    %v147 = vpack.c.b16 %v132, %v131
    %v148 = vpack.c.b16 %v134, %v133
    %v149 = vpack.c.b16 %v136, %v135
    %v150 = vpack.c.b16 %v138, %v137
    %v151 = vpack.c.b16 %v140, %v139
    %v152 = vpack.c.b16 %v142, %v141
    %v153 = vpack.c.b16 %v144, %v143
    %v154 = vpack.c.b16 %v146, %v145
    %163 = vmatprep.subr.bf16.mxu0 0
    %164 = vmatpush1.bf16.msra.mxu0 %v154
    %165 = vmatprep.subr.bf16.mxu0 0
    %166 = vmatpush1.bf16.msra.mxu0 %v153
    %167 = vmatprep.subr.bf16.mxu0 0
    %168 = vmatpush1.bf16.msra.mxu0 %v152
    %169 = vmatprep.subr.bf16.mxu0 0
    %170 = vmatpush1.bf16.msra.mxu0 %v151
    %171 = vmatprep.subr.bf16.mxu0 0
    %172 = vmatpush1.bf16.msra.mxu0 %v150
    %173 = vmatprep.subr.bf16.mxu0 0
    %174 = vmatpush1.bf16.msra.mxu0 %v149
    %175 = vmatprep.subr.bf16.mxu0 0
    %176 = vmatpush1.bf16.msra.mxu0 %v148
    %177 = vmatprep.subr.bf16.mxu0 0
    %178 = vmatpush1.bf16.msra.mxu0 %v147
    %179 = vmatprep.subr.bf16.mxu0 0
    %180 = vmatpush2.bf16.msra.mxu0 0
    %181 = vmatprep.subr.bf16.mxu0 0
    %182 = vmatpush2.bf16.msra.mxu0 0
    %183 = vmatprep.subr.bf16.mxu0 0
    %184 = vmatpush2.bf16.msra.mxu0 0
    %185 = vmatprep.subr.bf16.mxu0 0
    %186 = vmatpush2.bf16.msra.mxu0 0
    %187 = vmatprep.subr.bf16.mxu0 0
    %188 = vmatpush2.bf16.msra.mxu0 0
    %189 = vmatprep.subr.bf16.mxu0 0
    %190 = vmatpush2.bf16.msra.mxu0 0
    %191 = vmatprep.subr.bf16.mxu0 0
    %192 = vmatpush2.bf16.msra.mxu0 0
    %193 = vmatprep.subr.bf16.mxu0 0
    %194 = vmatpush2.bf16.msra.mxu0 0
    %195 = vmatprep.mubr.bf16.mxu0 0
    %196 = vmatmul.mubr.bf16.gmra.mxu0 %v91
    %v197 = vpop.f32.mrf.mxu0
    %v198 = vadd.f32 %v113, %v197
    %v199 = vpop.f32.mrf.mxu0
    %v200 = vpop.f32.mrf.mxu0
    %v201 = vadd.f32 %v113, %v200
    %v202 = vpop.f32.mrf.mxu0
    %203 = vdwg.mxu0
    %204 = vmax.xlane.f32.xlu0 %v198
    %v205 = vpop.xlane.xlu0 %204
    %206 = vmax.xlane.f32.xlu0 %v201
    %v207 = vpop.xlane.xlu0 %206
    %v208 = vsub.f32 %v198, %v205
    %v209 = vsub.f32 %v201, %v207
    %v210 = vmul.f32 %v208, 1.442695
    %v211 = vpow.pop %v210
    %v212 = vmul.f32 %v209, 1.442695
    %v213 = vpow.pop %v212
    %214 = vadd.xlane.f32.xlu0 %v211
    %v215 = vpop.xlane.xlu0 %214
    %216 = vadd.xlane.f32.xlu0 %v213
    %v217 = vpop.xlane.xlu0 %216
    %v218 = vrcp.pop %v215
    %v219 = vrcp.pop %v217
    %v220 = vmul.f32 %v211, %v218
    %v221 = vmul.f32 %v213, %v219
    %v222 = vsel %vm87, %v220, 0.0
    %v223 = vsel %vm88, %v221, 0.0
    %v224 = vld [vmem:[#allocation7] sm:$0xff]
    %v225 = vld [vmem:[#allocation7 + $0x8] sm:$0xff]
    %v226 = vld [vmem:[#allocation7 + $0x10] sm:$0xff]
    %v227 = vld [vmem:[#allocation7 + $0x18] sm:$0xff]
    %v228 = vld [vmem:[#allocation7 + $0x20] sm:$0xff]
    %v229 = vld [vmem:[#allocation7 + $0x28] sm:$0xff]
    %v230 = vld [vmem:[#allocation7 + $0x30] sm:$0xff]
    %v231 = vld [vmem:[#allocation7 + $0x38] sm:$0xff]
    %v232 = vld [vmem:[#allocation7 + $0x40] sm:$0xff]
    %v233 = vld [vmem:[#allocation7 + $0x48] sm:$0xff]
    %v234 = vld [vmem:[#allocation7 + $0x50] sm:$0xff]
    %v235 = vld [vmem:[#allocation7 + $0x58] sm:$0xff]
    %v236 = vld [vmem:[#allocation7 + $0x60] sm:$0xff]
    %v237 = vld [vmem:[#allocation7 + $0x68] sm:$0xff]
    %v238 = vld [vmem:[#allocation7 + $0x70] sm:$0xff]
    %v239 = vld [vmem:[#allocation7 + $0x78] sm:$0xff]
    %v240 = vpack.c.bf16 %v223, %v222
    %241 = vxpose.xlu0.c.b16.start [1/8] %v240, 128
    %242 = vxpose.xlu0.c.b16.cont [2/8] 0, 128
    %243 = vxpose.xlu0.c.b16.cont [3/8] 0, 128
    %244 = vxpose.xlu0.c.b16.cont [4/8] 0, 128
    %245 = vxpose.xlu0.c.b16.cont [5/8] 0, 128
    %246 = vxpose.xlu0.c.b16.cont [6/8] 0, 128
    %247 = vxpose.xlu0.c.b16.cont [7/8] 0, 128
    %248 = vxpose.xlu0.c.b16.end [8/8] 0, 128
    %v249 = vpop.trf.xlu0
    %v250 = vpop.trf.xlu0
    %v251 = vpop.trf.xlu0
    %v252 = vpop.trf.xlu0
    %v253 = vpop.trf.xlu0
    %v254 = vpop.trf.xlu0
    %v255 = vpop.trf.xlu0
    %v256 = vpop.trf.xlu0
    %vm257 = vcmask 130048
    %v259 = vsel %vm257, %v249, 0
    %v262 = vsel %vm257, %v250, 0
    %v265 = vsel %vm257, %v251, 0
    %v268 = vsel %vm257, %v252, 0
    %v271 = vsel %vm257, %v253, 0
    %v274 = vsel %vm257, %v254, 0
    %v277 = vsel %vm257, %v255, 0
    %v280 = vsel %vm257, %v256, 0
    %282 = vmatprep.subr.bf16.mxu0 0
    %283 = vmatpush1.bf16.msra.mxu0 0
    %284 = vmatprep.subr.bf16.mxu0 0
    %285 = vmatpush1.bf16.msra.mxu0 0
    %286 = vmatprep.subr.bf16.mxu0 0
    %287 = vmatpush1.bf16.msra.mxu0 0
    %288 = vmatprep.subr.bf16.mxu0 0
    %289 = vmatpush1.bf16.msra.mxu0 0
    %290 = vmatprep.subr.bf16.mxu0 0
    %291 = vmatpush1.bf16.msra.mxu0 0
    %292 = vmatprep.subr.bf16.mxu0 0
    %293 = vmatpush1.bf16.msra.mxu0 0
    %294 = vmatprep.subr.bf16.mxu0 0
    %295 = vmatpush1.bf16.msra.mxu0 0
    %296 = vmatprep.subr.bf16.mxu0 0
    %297 = vmatpush1.bf16.msra.mxu0 %v91
    %298 = vmatprep.subr.bf16.mxu0 0
    %299 = vmatpush2.bf16.msra.mxu0 0
    %300 = vmatprep.subr.bf16.mxu0 0
    %301 = vmatpush2.bf16.msra.mxu0 0
    %302 = vmatprep.subr.bf16.mxu0 0
    %303 = vmatpush2.bf16.msra.mxu0 0
    %304 = vmatprep.subr.bf16.mxu0 0
    %305 = vmatpush2.bf16.msra.mxu0 0
    %306 = vmatprep.subr.bf16.mxu0 0
    %307 = vmatpush2.bf16.msra.mxu0 0
    %308 = vmatprep.subr.bf16.mxu0 0
    %309 = vmatpush2.bf16.msra.mxu0 0
    %310 = vmatprep.subr.bf16.mxu0 0
    %311 = vmatpush2.bf16.msra.mxu0 0
    %312 = vmatprep.subr.bf16.mxu0 0
    %313 = vmatpush2.bf16.msra.mxu0 0
    %314 = vmatprep.mubr.bf16.mxu0 0
    %315 = vmatmul.mubr.bf16.gmra.mxu0 %v259
    %v316 = vpop.f32.mrf.mxu0
    %v317 = vadd.f32 0.0, %v316
    %v318 = vpop.f32.mrf.mxu0
    %v319 = vpop.f32.mrf.mxu0
    %v320 = vadd.f32 0.0, %v319
    %v321 = vpop.f32.mrf.mxu0
    %322 = vmatprep.mubr.bf16.mxu0 0
    %323 = vmatmul.mubr.bf16.gmra.mxu0 %v262
    %v324 = vpop.f32.mrf.mxu0
    %v325 = vadd.f32 0.0, %v324
    %v326 = vpop.f32.mrf.mxu0
    %v327 = vpop.f32.mrf.mxu0
    %v328 = vadd.f32 0.0, %v327
    %v329 = vpop.f32.mrf.mxu0
    %330 = vmatprep.mubr.bf16.mxu0 0
    %331 = vmatmul.mubr.bf16.gmra.mxu0 %v265
    %v332 = vpop.f32.mrf.mxu0
    %v333 = vadd.f32 0.0, %v332
    %v334 = vpop.f32.mrf.mxu0
    %v335 = vpop.f32.mrf.mxu0
    %v336 = vadd.f32 0.0, %v335
    %v337 = vpop.f32.mrf.mxu0
    %338 = vmatprep.mubr.bf16.mxu0 0
    %339 = vmatmul.mubr.bf16.gmra.mxu0 %v268
    %v340 = vpop.f32.mrf.mxu0
    %v341 = vadd.f32 0.0, %v340
    %v342 = vpop.f32.mrf.mxu0
    %v343 = vpop.f32.mrf.mxu0
    %v344 = vadd.f32 0.0, %v343
    %v345 = vpop.f32.mrf.mxu0
    %346 = vmatprep.mubr.bf16.mxu0 0
    %347 = vmatmul.mubr.bf16.gmra.mxu0 %v271
    %v348 = vpop.f32.mrf.mxu0
    %v349 = vadd.f32 0.0, %v348
    %v350 = vpop.f32.mrf.mxu0
    %v351 = vpop.f32.mrf.mxu0
    %v352 = vadd.f32 0.0, %v351
    %v353 = vpop.f32.mrf.mxu0
    %354 = vmatprep.mubr.bf16.mxu0 0
    %355 = vmatmul.mubr.bf16.gmra.mxu0 %v274
    %v356 = vpop.f32.mrf.mxu0
    %v357 = vadd.f32 0.0, %v356
    %v358 = vpop.f32.mrf.mxu0
    %v359 = vpop.f32.mrf.mxu0
    %v360 = vadd.f32 0.0, %v359
    %v361 = vpop.f32.mrf.mxu0
    %362 = vmatprep.mubr.bf16.mxu0 0
    %363 = vmatmul.mubr.bf16.gmra.mxu0 %v277
    %v364 = vpop.f32.mrf.mxu0
    %v365 = vadd.f32 0.0, %v364
    %v366 = vpop.f32.mrf.mxu0
    %v367 = vpop.f32.mrf.mxu0
    %v368 = vadd.f32 0.0, %v367
    %v369 = vpop.f32.mrf.mxu0
    %370 = vmatprep.mubr.bf16.mxu0 0
    %371 = vmatmul.mubr.bf16.gmra.mxu0 %v280
    %v372 = vpop.f32.mrf.mxu0
    %v373 = vadd.f32 0.0, %v372
    %v374 = vpop.f32.mrf.mxu0
    %v375 = vpop.f32.mrf.mxu0
    %v376 = vadd.f32 0.0, %v375
    %v377 = vpop.f32.mrf.mxu0
    %378 = vdwg.mxu0
    %v379 = vadd.f32 %v224, %v317
    %v380 = vadd.f32 %v225, %v320
    %v381 = vadd.f32 %v226, %v325
    %v382 = vadd.f32 %v227, %v328
    %v383 = vadd.f32 %v228, %v333
    %v384 = vadd.f32 %v229, %v336
    %v385 = vadd.f32 %v230, %v341
    %v386 = vadd.f32 %v231, %v344
    %v387 = vadd.f32 %v232, %v349
    %v388 = vadd.f32 %v233, %v352
    %v389 = vadd.f32 %v234, %v357
    %v390 = vadd.f32 %v235, %v360
    %v391 = vadd.f32 %v236, %v365
    %v392 = vadd.f32 %v237, %v368
    %v393 = vadd.f32 %v238, %v373
    %v394 = vadd.f32 %v239, %v376
    %395 = vst [vmem:[#allocation7] sm:$0xff] %v379
    %396 = vst [vmem:[#allocation7 + $0x8] sm:$0xff] %v380
    %397 = vst [vmem:[#allocation7 + $0x10] sm:$0xff] %v381
    %398 = vst [vmem:[#allocation7 + $0x18] sm:$0xff] %v382
    %399 = vst [vmem:[#allocation7 + $0x20] sm:$0xff] %v383
    %400 = vst [vmem:[#allocation7 + $0x28] sm:$0xff] %v384
    %401 = vst [vmem:[#allocation7 + $0x30] sm:$0xff] %v385
    %402 = vst [vmem:[#allocation7 + $0x38] sm:$0xff] %v386
    %403 = vst [vmem:[#allocation7 + $0x40] sm:$0xff] %v387
    %404 = vst [vmem:[#allocation7 + $0x48] sm:$0xff] %v388
    %405 = vst [vmem:[#allocation7 + $0x50] sm:$0xff] %v389
    %406 = vst [vmem:[#allocation7 + $0x58] sm:$0xff] %v390
    %407 = vst [vmem:[#allocation7 + $0x60] sm:$0xff] %v391
    %408 = vst [vmem:[#allocation7 + $0x68] sm:$0xff] %v392
    %409 = vst [vmem:[#allocation7 + $0x70] sm:$0xff] %v393
    %410 = vst [vmem:[#allocation7 + $0x78] sm:$0xff] %v394
    // Predicated region
    $region26: #{tpu_custom_call.1} parent=1 // pred_check
      _
    $region27: #{tpu_custom_call.1} parent=1 // pred_check_branch
      %412 = sbr.rel (0) target = $region29
    $region28: #{tpu_custom_call.1} parent=1 // pred_region
      %s414 = ssub.s32 2048, 2048
      %415 = vsyncadd [#allocation4], %s414
      %s416 = sshll.u32 [#allocation7], 4
      %s417 = int_to_ptr.vmem [resolvable:$true] %s416
      %422 = dma.vmem_to_hbm [thread:$0]  %s417, 2048, %s3, [#allocation4], 128, 128, 8
    $region29: #{tpu_custom_call.1} parent=1 // pred_fallthru
      _
    // Predicated region
    $region30: #{tpu_custom_call.1} parent=1 // pred_check
      _
    $region31: #{tpu_custom_call.1} parent=1 // pred_check_branch
      %424 = sbr.rel (0) target = $region33
    $region32: #{tpu_custom_call.1} parent=1 // pred_region
      %425 = dma.done [#allocation4], 2048
    $region33: #{tpu_custom_call.1} parent=1 // pred_fallthru
      _
    %426 = vsyncpa [#allocation3], 1
    %427 = vsyncpa [#allocation6], 1
    %428 = vsyncpa [#allocation4], 1

</llo_original>
